<compile_context>
chip_gen: v7x
topology: tpu7x:2x2x1
jax: 0.10.0
libtpu: 0.0.40
codegen_flags: <defaults>
</compile_context>

<pallas_src>
import functools

import numpy as np
import jax
import jax.numpy as jnp
from jax.experimental import pallas as pl
from jax.experimental.pallas import tpu as pltpu

LN_EPS = 1e-5  # torch.nn.LayerNorm default


# --------------------------------------------------------------------------- per-generation budgets
def _tpu_vmem_capacity_bytes():
    try:
        info = pltpu.get_tpu_info()
        for name in ("vmem_capacity_bytes", "vmem_size_bytes", "vmem_bytes"):
            v = getattr(info, name, None)
            if v:
                return int(v)
    except Exception:
        pass
    return 128 * 1024 * 1024  # v5e / v6e default


_VMEM_CAP = _tpu_vmem_capacity_bytes()
# scoped budget ~ half of physical: 64 MiB on v5e/v6e, 32 MiB on v7x
_VMEM_LIMIT = int(min(max(_VMEM_CAP // 2, 32 * 1024 * 1024), 96 * 1024 * 1024))
_BIG_VMEM = _VMEM_CAP > 96 * 1024 * 1024
_TM_CAP = 512 if _BIG_VMEM else 256
_TN_CAP = 512 if _BIG_VMEM else 256
_TK_CAP = 512
_TF_CAP = 1024 if _BIG_VMEM else 512


def _pick_tile(dim, cap, align=128):
    """Largest tile <= cap dividing dim; prefers 128-aligned, then 8-aligned."""
    if dim <= cap:
        return dim
    for a in (align, 8):
        t = (cap // a) * a
        while t >= a:
            if dim % t == 0:
                return t
            t -= a
    # TODO(synk): pad the row dimension to a multiple of 8/128 instead of this
    #             full-dim fallback (only reached for pathological sizes).
    return dim


# --------------------------------------------------------------------------- generic tiled matmul (+bias)
def _matmul_bias_kernel(x_ref, w_ref, b_ref, o_ref, acc_ref):
    @pl.when(pl.program_id(2) == 0)
    def _():
        acc_ref[...] = jnp.zeros_like(acc_ref)

    acc_ref[...] += jnp.dot(x_ref[...], w_ref[...],
                            preferred_element_type=jnp.float32)

    @pl.when(pl.program_id(2) == pl.num_programs(2) - 1)
    def _():
        o_ref[...] = (acc_ref[...] + b_ref[...]).astype(o_ref.dtype)


def matmul_bias(x, w, b, *, tm_cap=None, tn_cap=None, tk_cap=None):
    """y = x @ W + b with M/N/K tiling and an f32 VMEM accumulator."""
    M, K = x.shape
    N = w.shape[1]
    tm = _pick_tile(M, tm_cap or _TM_CAP)
    tn = _pick_tile(N, tn_cap or _TN_CAP)
    tk = _pick_tile(K, tk_cap or _TK_CAP)
    return pl.pallas_call(
        _matmul_bias_kernel,
        out_shape=jax.ShapeDtypeStruct((M, N), x.dtype),
        grid=(M // tm, N // tn, K // tk),
        in_specs=[pl.BlockSpec((tm, tk), lambda i, j, k: (i, k)),
                  pl.BlockSpec((tk, tn), lambda i, j, k: (k, j)),
                  pl.BlockSpec((1, tn), lambda i, j, k: (0, j))],
        out_specs=pl.BlockSpec((tm, tn), lambda i, j, k: (i, j)),
        scratch_shapes=[pltpu.VMEM((tm, tn), jnp.float32)],
        compiler_params=pltpu.CompilerParams(
            dimension_semantics=("parallel", "parallel", "arbitrary"),
            vmem_limit_bytes=_VMEM_LIMIT),
    )(x, w, b.reshape(1, N))


# --------------------------------------------------------------------------- fused QKV projection -> head-split layout
def _qkv_proj_kernel(x_ref, w_ref, b_ref, o_ref, acc_ref, *, H, Dh, groups):
    @pl.when(pl.program_id(2) == 0)
    def _():
        acc_ref[...] = jnp.zeros_like(acc_ref)

    acc_ref[...] += jnp.dot(x_ref[...], w_ref[...],
                            preferred_element_type=jnp.float32)

    @pl.when(pl.program_id(2) == pl.num_programs(2) - 1)
    def _():
        y = acc_ref[...] + b_ref[...]
        D = H * Dh
        for g in range(groups):          # static loop over q/k/v groups in this tile
            for h in range(H):           # static head slices, written head-split
                c0 = g * D + h * Dh
                o_ref[0, h, g] = y[:, c0:c0 + Dh].astype(o_ref.dtype)


def qkv_project_split_heads(x2d, wqkv, bqkv, *, B, S, H, Dh):
    """(B*S, D) @ (D, 3D) + b, written directly as (B, H, 3, S, Dh) -- no HBM transpose."""
    M, K = x2d.shape
    D = H * Dh
    N = 3 * D
    assert M == B * S
    nt = 3 if (D % 128 == 0) else 1      # lane-aligned column split if possible
    tn = N // nt
    groups = tn // D
    tk = _pick_tile(K, _TK_CAP)
    kernel = functools.partial(_qkv_proj_kernel, H=H, Dh=Dh, groups=groups)
    return pl.pallas_call(
        kernel,
        out_shape=jax.ShapeDtypeStruct((B, H, 3, S, Dh), x2d.dtype),
        grid=(B, nt, K // tk),
        in_specs=[pl.BlockSpec((S, tk), lambda b, t, k: (b, k)),
                  pl.BlockSpec((tk, tn), lambda b, t, k: (k, t)),
                  pl.BlockSpec((1, tn), lambda b, t, k: (0, t))],
        out_specs=pl.BlockSpec((1, H, groups, S, Dh),
                               lambda b, t, k: (b, 0, t, 0, 0)),
        scratch_shapes=[pltpu.VMEM((S, tn), jnp.float32)],
        compiler_params=pltpu.CompilerParams(
            dimension_semantics=("parallel", "parallel", "arbitrary"),
            vmem_limit_bytes=_VMEM_LIMIT),
    )(x2d, wqkv, bqkv)


# --------------------------------------------------------------------------- attention, one (batch, head) per grid step
def _attn_kernel(qkv_ref, bias_ref, o_ref, p_ref, *, scale):
    q = qkv_ref[0, 0, 0]                                   # (S, Dh)
    k = qkv_ref[0, 0, 1]
    v = qkv_ref[0, 0, 2]
    # contract last dims of q and k -> no XLU transpose of K
    s = jax.lax.dot_general(q, k, (((1,), (1,)), ((), ())),
                            preferred_element_type=jnp.float32)
    s = s * scale + bias_ref[0]                            # (S,S) + (1,S) key-padding bias
    m = jnp.max(s, axis=-1, keepdims=True)
    e = jnp.exp(s - m)
    l = jnp.sum(e, axis=-1, keepdims=True)
    p = e / l                                              # exact probs (returned to caller)
    p_ref[0, 0] = p.astype(p_ref.dtype)
    o_ref[0, 0] = jnp.dot(p.astype(v.dtype), v,
                          preferred_element_type=jnp.float32).astype(o_ref.dtype)


def attention(qkvh, bias, *, probs_dtype):
    B, H, _, S, Dh = qkvh.shape
    scale = 1.0 / float(np.sqrt(Dh))
    # TODO(synk): add a query/key tile axis for very long S (module's attn_weight
    #             output still forces a full (S,S) per head).
    kernel = functools.partial(_attn_kernel, scale=scale)
    return pl.pallas_call(
        kernel,
        out_shape=(jax.ShapeDtypeStruct((B, H, S, Dh), qkvh.dtype),
                   jax.ShapeDtypeStruct((B, H, S, S), probs_dtype)),
        grid=(B, H),
        in_specs=[pl.BlockSpec((1, 1, 3, S, Dh), lambda b, h: (b, h, 0, 0, 0)),
                  pl.BlockSpec((1, 1, S), lambda b, h: (b, 0, 0))],
        out_specs=(pl.BlockSpec((1, 1, S, Dh), lambda b, h: (b, h, 0, 0)),
                   pl.BlockSpec((1, 1, S, S), lambda b, h: (b, h, 0, 0))),
        compiler_params=pltpu.CompilerParams(
            dimension_semantics=("parallel", "parallel"),
            vmem_limit_bytes=_VMEM_LIMIT),
    )(qkvh, bias)


# --------------------------------------------------------------------------- Wo projection (head merge) + residual + LayerNorm
def _proj_heads_add_ln_kernel(ao_ref, wo_ref, bo_ref, res_ref, g_ref, be_ref,
                              o_ref, acc_ref):
    h = pl.program_id(1)

    @pl.when(h == 0)
    def _():
        acc_ref[...] = jnp.zeros_like(acc_ref)

    acc_ref[...] += jnp.dot(ao_ref[0, 0], wo_ref[0],
                            preferred_element_type=jnp.float32)

    @pl.when(h == pl.num_programs(1) - 1)
    def _():
        y = acc_ref[...] + bo_ref[...] + res_ref[0].astype(jnp.float32)
        mu = jnp.mean(y, axis=-1, keepdims=True)
        var = jnp.mean(jnp.square(y - mu), axis=-1, keepdims=True)
        yn = (y - mu) * jax.lax.rsqrt(var + LN_EPS)
        o_ref[0] = (yn * g_ref[...] + be_ref[...]).astype(o_ref.dtype)


def proj_heads_add_layernorm(attn_out, wo_h, bo, res, gamma, beta):
    B, H, S, Dh = attn_out.shape
    D = wo_h.shape[2]
    return pl.pallas_call(
        _proj_heads_add_ln_kernel,
        out_shape=jax.ShapeDtypeStruct((B, S, D), res.dtype),
        grid=(B, H),
        in_specs=[pl.BlockSpec((1, 1, S, Dh), lambda b, h: (b, h, 0, 0)),
                  pl.BlockSpec((1, Dh, D), lambda b, h: (h, 0, 0)),
                  pl.BlockSpec((1, D), lambda b, h: (0, 0)),
                  pl.BlockSpec((1, S, D), lambda b, h: (b, 0, 0)),
                  pl.BlockSpec((1, D), lambda b, h: (0, 0)),
                  pl.BlockSpec((1, D), lambda b, h: (0, 0))],
        out_specs=pl.BlockSpec((1, S, D), lambda b, h: (b, 0, 0)),
        scratch_shapes=[pltpu.VMEM((S, D), jnp.float32)],
        compiler_params=pltpu.CompilerParams(
            dimension_semantics=("parallel", "arbitrary"),
            vmem_limit_bytes=_VMEM_LIMIT),
    )(attn_out, wo_h, bo, res, gamma, beta)


# --------------------------------------------------------------------------- FFN (F streamed) + residual + LayerNorm
def _ffn_add_ln_kernel(x_ref, w1_ref, w2_ref, b2_ref, g_ref, be_ref, o_ref, acc_ref):
    f = pl.program_id(1)

    @pl.when(f == 0)
    def _():
        acc_ref[...] = jnp.zeros_like(acc_ref)

    h = jnp.maximum(
        jnp.dot(x_ref[...], w1_ref[...], preferred_element_type=jnp.float32), 0.0)
    acc_ref[...] += jnp.dot(h.astype(w2_ref.dtype), w2_ref[...],
                            preferred_element_type=jnp.float32)

    @pl.when(f == pl.num_programs(1) - 1)
    def _():
        # x doubles as the residual (post-sa-LN activations)
        y = acc_ref[...] + b2_ref[...] + x_ref[...].astype(jnp.float32)
        mu = jnp.mean(y, axis=-1, keepdims=True)
        var = jnp.mean(jnp.square(y - mu), axis=-1, keepdims=True)
        yn = (y - mu) * jax.lax.rsqrt(var + LN_EPS)
        o_ref[...] = (yn * g_ref[...] + be_ref[...]).astype(o_ref.dtype)


def ffn_add_layernorm(x, w1, w2, b2, gamma, beta, *, out_dtype):
    M, D = x.shape
    F = w1.shape[1]
    tm = _pick_tile(M, _TM_CAP)
    tf = _pick_tile(F, _TF_CAP)       # stream W1/W2 over the F reduction axis
    return pl.pallas_call(
        _ffn_add_ln_kernel,
        out_shape=jax.ShapeDtypeStruct((M, D), out_dtype),
        grid=(M // tm, F // tf),
        in_specs=[pl.BlockSpec((tm, D), lambda i, f: (i, 0)),
                  pl.BlockSpec((D, tf), lambda i, f: (0, f)),
                  pl.BlockSpec((tf, D), lambda i, f: (f, 0)),
                  pl.BlockSpec((1, D), lambda i, f: (0, 0)),
                  pl.BlockSpec((1, D), lambda i, f: (0, 0)),
                  pl.BlockSpec((1, D), lambda i, f: (0, 0))],
        out_specs=pl.BlockSpec((tm, D), lambda i, f: (i, 0)),
        scratch_shapes=[pltpu.VMEM((tm, D), jnp.float32)],
        compiler_params=pltpu.CompilerParams(
            dimension_semantics=("parallel", "arbitrary"),
            vmem_limit_bytes=_VMEM_LIMIT),
    )(x, w1, w2, b2, gamma, beta)


# --------------------------------------------------------------------------- params
def xavier_uniform(key, fan_in, fan_out, shape):
    a = float(np.sqrt(6.0 / (fan_in + fan_out)))
    return jax.random.uniform(key, shape, jnp.float32, -a, a)


def init_params(key, head_num, model_dim, ffn_dim):
    ks = jax.random.split(key, 12)
    D, F = model_dim, ffn_dim
    params = {}
    wq = xavier_uniform(ks[0], D, D, (D, D))
    wk = xavier_uniform(ks[1], D, D, (D, D))
    wv = xavier_uniform(ks[2], D, D, (D, D))
    params["Wqkv"] = jnp.concatenate([wq, wk, wv], axis=1)     # (D, 3D), y = x @ W + b
    params["bqkv"] = jnp.zeros((3 * D,), jnp.float32)
    params["Wo"] = xavier_uniform(ks[3], D, D, (D, D))
    params["bo"] = jnp.zeros((D,), jnp.float32)
    params["g_sa"] = jnp.ones((D,), jnp.float32)
    params["b_sa"] = jnp.zeros((D,), jnp.float32)
    params["g_ffn"] = jnp.ones((D,), jnp.float32)
    params["b_ffn"] = jnp.zeros((D,), jnp.float32)
    # SVD-parameterized first FFN weight (encoder_svdchange)
    temp_weight = np.asarray(jax.random.normal(ks[4], (D, F), jnp.float32))
    U, Sv, Vh = np.linalg.svd(temp_weight, full_matrices=True)  # torch stores V.t() == Vh
    params["U"] = jnp.asarray(U, jnp.float32)                   # (D, D) buffer
    params["Vt"] = jnp.asarray(Vh, jnp.float32)                 # (F, F) buffer
    params["diag_param"] = jnp.asarray(Sv, jnp.float32)         # (min(D,F),) parameter
    fc2_w = xavier_uniform(ks[5], F, D, (D, F))                 # torch layout (out, in)
    params["W2"] = fc2_w.T                                      # (F, D) for y = h @ W2
    bound = 1.0 / float(np.sqrt(F))
    params["b2"] = jax.random.uniform(ks[6], (D,), jnp.float32, -bound, bound)
    return params


def prepare_params(params, head_num, compute_dtype=jnp.bfloat16):
    """One-time prep: rebuild W1 = U @ E @ Vt (f32), cast matmul weights to bf16."""
    D = params["Wo"].shape[0]
    F = params["W2"].shape[0]
    Dh = D // head_num
    m = min(params["U"].shape[0], F)
    u_scaled = params["U"][:, :m] * params["diag_param"][None, :]
    w1_f32 = matmul_bias(u_scaled, params["Vt"][:m, :],
                         jnp.zeros((F,), jnp.float32))          # (D, F), f32 once
    cdt = compute_dtype
    return {
        "Wqkv": params["Wqkv"].astype(cdt),
        "bqkv": params["bqkv"].reshape(1, 3 * D),
        "Wo": params["Wo"].reshape(head_num, Dh, D).astype(cdt),
        "bo": params["bo"].reshape(1, D),
        "g_sa": params["g_sa"].reshape(1, D),
        "b_sa": params["b_sa"].reshape(1, D),
        "W1": w1_f32.astype(cdt),
        "W2": params["W2"].astype(cdt),
        "b2": params["b2"].reshape(1, D),
        "g_ffn": params["g_ffn"].reshape(1, D),
        "b_ffn": params["b_ffn"].reshape(1, D),
    }


# --------------------------------------------------------------------------- forward
def transformer_encoder_layer(x, padding_mask, prepared, head_num):
    """post_norm=True forward.  x: (B, S, D); padding_mask: (B, S) bool (True = pad)."""
    B, S, D = x.shape
    H = head_num
    Dh = D // H
    cdt = prepared["Wqkv"].dtype
    xc = x.astype(cdt)                       # bf16 activation stream
    x2d = xc.reshape(B * S, D)

    # fused Q/K/V projection, written head-split: (B, H, 3, S, Dh)
    qkvh = qkv_project_split_heads(x2d, prepared["Wqkv"], prepared["bqkv"],
                                   B=B, S=S, H=H, Dh=Dh)

    # additive key-padding bias (B, 1, S); fully-padded rows give a uniform dist.
    bias = jnp.where(padding_mask[:, None, :], jnp.float32(-1e9), jnp.float32(0.0))
    # TODO(synk): optional attn_mask argument not wired through (demo passes None).

    attn_out, attn_probs = attention(qkvh, bias, probs_dtype=cdt)

    # Wo projection (head merge via H-reduction) + residual + sa LayerNorm
    y = proj_heads_add_layernorm(attn_out, prepared["Wo"], prepared["bo"],
                                 xc, prepared["g_sa"], prepared["b_sa"])
    y2d = y.reshape(B * S, D)

    # FFN (W1 streamed over F) + residual + ffn LayerNorm, output in x.dtype
    out2d = ffn_add_layernorm(y2d, prepared["W1"], prepared["W2"], prepared["b2"],
                              prepared["g_ffn"], prepared["b_ffn"],
                              out_dtype=x.dtype)

    return out2d.reshape(B, S, D), attn_probs


# --------------------------------------------------------------------------- main
if __name__ == "__main__":
    B, S = 2, 16
    HEAD_NUM, MODEL_DIM, FFN_DIM = 4, 128, 256

    key = jax.random.PRNGKey(0)
    kx, kp = jax.random.split(key)

    params = init_params(kp, HEAD_NUM, MODEL_DIM, FFN_DIM)
    prepared = prepare_params(params, HEAD_NUM, compute_dtype=jnp.bfloat16)

    x = jax.random.normal(kx, (B, S, MODEL_DIM), jnp.float32)
    padding_mask = jnp.zeros((B, S), jnp.bool_).at[1, 12:].set(True)

    out, attn_w = transformer_encoder_layer(x, padding_mask, prepared, HEAD_NUM)
    out = jax.block_until_ready(out)
    attn_w = jax.block_until_ready(attn_w)

    assert out.shape == (B, S, MODEL_DIM)
    assert attn_w.shape == (B, HEAD_NUM, S, S)
    assert bool(jnp.all(jnp.isfinite(out)))
    assert bool(jnp.all(jnp.isfinite(attn_w.astype(jnp.float32))))
    print("KERNEL_OK")
</pallas_src>

<mosaic_0001>
module attributes {stable_mosaic.version = 11 : i64} {
  func.func @_matmul_bias_kernel(%arg0: i32, %arg1: i32, %arg2: i32, %arg3: memref<128x128xf32, #tpu.memory_space<vmem>>, %arg4: memref<128x256xf32, #tpu.memory_space<vmem>>, %arg5: memref<1x256xf32, #tpu.memory_space<vmem>>, %arg6: memref<128x256xf32, #tpu.memory_space<vmem>>, %arg7: memref<128x256xf32, #tpu.memory_space<vmem>>) attributes {dimension_semantics = [#tpu.dimension_semantics<parallel>, #tpu.dimension_semantics<parallel>, #tpu.dimension_semantics<arbitrary>], iteration_bounds = array<i64: 1, 1, 1>, scalar_prefetch = 0 : i64, scratch_operands = 1 : i64, tpu.core_type = #tpu.core_type<tc>, window_params = [{transform_indices = @transform_0, window_bounds = array<i64: 128, 128>}, {transform_indices = @transform_1, window_bounds = array<i64: 128, 256>}, {transform_indices = @transform_2, window_bounds = array<i64: 1, 256>}, {transform_indices = @transform_3, window_bounds = array<i64: 128, 256>}]} {
    %c0_i32 = arith.constant 0 : i32
    %0 = arith.cmpi eq, %arg2, %c0_i32 : i32
    %1 = arith.extui %0 : i1 to i32
    %c0_i32_0 = arith.constant 0 : i32
    %2 = arith.cmpi ne, %1, %c0_i32_0 : i32
    scf.if %2 {
      %cst_10 = arith.constant 0.000000e+00 : f32
      %12 = vector.broadcast %cst_10 : f32 to vector<128x256xf32>
      %c0_11 = arith.constant 0 : index
      %c0_12 = arith.constant 0 : index
      %13 = vector.load %arg7[%c0_11, %c0_12] : memref<128x256xf32, #tpu.memory_space<vmem>>, vector<128x256xf32>
      tpu.vector_store %arg7[%c0_11, %c0_12], %12 {strides = array<i32>} : memref<128x256xf32, #tpu.memory_space<vmem>>, vector<128x256xf32>,
    } else {
    }
    %c0 = arith.constant 0 : index
    %c0_1 = arith.constant 0 : index
    %3 = vector.load %arg7[%c0, %c0_1] : memref<128x256xf32, #tpu.memory_space<vmem>>, vector<128x256xf32>
    %c0_2 = arith.constant 0 : index
    %c0_3 = arith.constant 0 : index
    %4 = vector.load %arg3[%c0_2, %c0_3] : memref<128x128xf32, #tpu.memory_space<vmem>>, vector<128x128xf32>
    %c0_4 = arith.constant 0 : index
    %c0_5 = arith.constant 0 : index
    %5 = vector.load %arg4[%c0_4, %c0_5] : memref<128x256xf32, #tpu.memory_space<vmem>>, vector<128x256xf32>
    %cst = arith.constant dense<0.000000e+00> : vector<128x256xf32>
    %6 = tpu.matmul %4, %5, %cst {dimension_numbers = #tpu.dot_dimension_numbers<[1], [0], [0], [1], [0, 0, 1, 1], [], []>} : vector<128x128xf32>, vector<128x256xf32>, vector<128x256xf32> -> vector<128x256xf32>
    %7 = arith.addf %3, %6 : vector<128x256xf32>
    %c0_6 = arith.constant 0 : index
    %c0_7 = arith.constant 0 : index
    %8 = vector.load %arg7[%c0_6, %c0_7] : memref<128x256xf32, #tpu.memory_space<vmem>>, vector<128x256xf32>
    tpu.vector_store %arg7[%c0_6, %c0_7], %7 {strides = array<i32>} : memref<128x256xf32, #tpu.memory_space<vmem>>, vector<128x256xf32>,
    %c0_i32_8 = arith.constant 0 : i32
    %9 = arith.cmpi eq, %arg2, %c0_i32_8 : i32
    %10 = arith.extui %9 : i1 to i32
    %c0_i32_9 = arith.constant 0 : i32
    %11 = arith.cmpi ne, %10, %c0_i32_9 : i32
    scf.if %11 {
      %c0_10 = arith.constant 0 : index
      %c0_11 = arith.constant 0 : index
      %12 = vector.load %arg7[%c0_10, %c0_11] : memref<128x256xf32, #tpu.memory_space<vmem>>, vector<128x256xf32>
      %c0_12 = arith.constant 0 : index
      %c0_13 = arith.constant 0 : index
      %13 = vector.load %arg5[%c0_12, %c0_13] : memref<1x256xf32, #tpu.memory_space<vmem>>, vector<1x256xf32>
      %14 = vector.broadcast %13 : vector<1x256xf32> to vector<128x256xf32>
      %15 = arith.addf %12, %14 : vector<128x256xf32>
      %c0_14 = arith.constant 0 : index
      %c0_15 = arith.constant 0 : index
      %16 = vector.load %arg6[%c0_14, %c0_15] : memref<128x256xf32, #tpu.memory_space<vmem>>, vector<128x256xf32>
      tpu.vector_store %arg6[%c0_14, %c0_15], %15 {strides = array<i32>} : memref<128x256xf32, #tpu.memory_space<vmem>>, vector<128x256xf32>,
    } else {
    }
    return
  }
  func.func @transform_0(%arg0: i32, %arg1: i32, %arg2: i32) -> (i32, i32) {
    %c0_i32 = arith.constant 0 : i32
    return %arg0, %arg2 : i32, i32
  }
  func.func @transform_1(%arg0: i32, %arg1: i32, %arg2: i32) -> (i32, i32) {
    %c0_i32 = arith.constant 0 : i32
    return %arg2, %arg1 : i32, i32
  }
  func.func @transform_2(%arg0: i32, %arg1: i32, %arg2: i32) -> (i32, i32) {
    %c0_i32 = arith.constant 0 : i32
    %c0_i32_0 = arith.constant 0 : i32
    return %c0_i32, %arg1 : i32, i32
  }
  func.func @transform_3(%arg0: i32, %arg1: i32, %arg2: i32) -> (i32, i32) {
    %c0_i32 = arith.constant 0 : i32
    return %arg0, %arg1 : i32, i32
  }
}

</mosaic_0001>

<llo_original>
// kernel: tpu_custom_call.1
$region0: #{tpu_custom_call.1}
  #allocation0 [shape = 'u32[]', space=smem, size = 0x4, offset = 0x4, fixed_abs, tag = 'smem constant byte address 0x4 - core index']
  #allocation1 [shape = 'u32[144,128]{1,0:T(1,128)}', space=vmem, size = 0x12000, scoped, tag = 'internal scratch']
  #allocation2 [shape = 'f32[128,256]{1,0:T(8,128)}', space=vmem, size = 0x20000, scoped, tag = 'scratch operand']
  %s0 = inlined_call_operand.hbm [shape: f32[128,128], index: 0, kind: input, shape index: {}]
  %s1 = inlined_call_operand.hbm [shape: f32[128,256], index: 1, kind: input, shape index: {}]
  %s2 = inlined_call_operand.hbm [shape: f32[1,256], index: 2, kind: input, shape index: {}]
  %s3 = inlined_call_operand.hbm [shape: f32[128,256], index: 3, kind: output, shape index: {}]
  %s4 = sld [smem:[#allocation0]]
  $region42: #{tpu_custom_call.1} parent=0
    _
  %s6 = ssub.s32 1, %s4
  %s7 = scalar_select 0, %s6, %s4
  $region1: #{tpu_custom_call.1} parent=0
    #allocation3 [shape = 'u8[65536]{0}', space=vmem, size = 0x10000, scoped, tag = 'input window, operand 0, single buffered']
    #allocation4 [shape = 's32[1]{0}', space=sflag, size = 0x4, scoped, tag = 'scoped memory for tpu_custom_call.1']
    #allocation5 [shape = 's32[1]{0}', space=sflag, size = 0x4, scoped, tag = 'scoped memory for tpu_custom_call.1']
    #allocation6 [shape = 'u8[131072]{0}', space=vmem, size = 0x20000, scoped, tag = 'input window, operand 1, single buffered']
    #allocation7 [shape = 's32[1]{0}', space=sflag, size = 0x4, scoped, tag = 'scoped memory for tpu_custom_call.1']
    #allocation8 [shape = 'u8[1024]{0}', space=vmem, size = 0x400, scoped, tag = 'input window, operand 2, single buffered']
    #allocation9 [shape = 'u8[131072]{0}', space=vmem, size = 0x20000, scoped, tag = 'output window, operand 0, single buffered']
    %8 = vsyncpa [#allocation4], 0
    %9 = vsyncpa [#allocation7], 0
    %10 = vsyncpa [#allocation5], 0
    // Predicated region
    $region2: #{tpu_custom_call.1} parent=1 // pred_check
      _
    $region3: #{tpu_custom_call.1} parent=1 // pred_check_branch
      %12 = sbr.rel (0) target = $region5
    $region4: #{tpu_custom_call.1} parent=1 // pred_region
      %s14 = ssub.s32 2048, 2048
      %15 = vsyncadd [#allocation4], %s14
      %s16 = sshll.u32 [#allocation3], 4
      %s17 = int_to_ptr.vmem [resolvable:$true] %s16
      %22 = dma.hbm_to_vmem [thread:$0]  %s0, 2048, %s17, [#allocation4], 128, 128, 8
    $region5: #{tpu_custom_call.1} parent=1 // pred_fallthru
      _
    // Predicated region
    $region6: #{tpu_custom_call.1} parent=1 // pred_check
      _
    $region7: #{tpu_custom_call.1} parent=1 // pred_check_branch
      %24 = sbr.rel (0) target = $region9
    $region8: #{tpu_custom_call.1} parent=1 // pred_region
      %s26 = ssub.s32 4096, 4096
      %27 = vsyncadd [#allocation7], %s26
      %s28 = sshll.u32 [#allocation6], 4
      %s29 = int_to_ptr.vmem [resolvable:$true] %s28
      %34 = dma.hbm_to_vmem [thread:$0]  %s1, 4096, %s29, [#allocation7], 256, 256, 16
    $region9: #{tpu_custom_call.1} parent=1 // pred_fallthru
      _
    // Predicated region
    $region10: #{tpu_custom_call.1} parent=1 // pred_check
      _
    $region11: #{tpu_custom_call.1} parent=1 // pred_check_branch
      %36 = sbr.rel (0) target = $region13
    $region12: #{tpu_custom_call.1} parent=1 // pred_region
      %s38 = ssub.s32 32, 32
      %39 = vsyncadd [#allocation7], %s38
      %s41 = sshll.u32 [#allocation8], 4
      %s42 = int_to_ptr.vmem [resolvable:$true] %s41
      %44 = dma.hbm_to_vmem [thread:$0]  %s2, 32, %s42, [#allocation7]
    $region13: #{tpu_custom_call.1} parent=1 // pred_fallthru
      _
    // Predicated region
    $region14: #{tpu_custom_call.1} parent=1 // pred_check
      _
    $region15: #{tpu_custom_call.1} parent=1 // pred_check_branch
      %46 = sbr.rel (0) target = $region17
    $region16: #{tpu_custom_call.1} parent=1 // pred_region
      %47 = dma.done [#allocation4], 2048
    $region17: #{tpu_custom_call.1} parent=1 // pred_fallthru
      _
    // Predicated region
    $region18: #{tpu_custom_call.1} parent=1 // pred_check
      _
    $region19: #{tpu_custom_call.1} parent=1 // pred_check_branch
      %49 = sbr.rel (0) target = $region21
    $region20: #{tpu_custom_call.1} parent=1 // pred_region
      %50 = dma.done [#allocation7], 4096
    $region21: #{tpu_custom_call.1} parent=1 // pred_fallthru
      _
    // Predicated region
    $region22: #{tpu_custom_call.1} parent=1 // pred_check
      _
    $region23: #{tpu_custom_call.1} parent=1 // pred_check_branch
      %52 = sbr.rel (0) target = $region25
    $region24: #{tpu_custom_call.1} parent=1 // pred_region
      %53 = dma.done [#allocation7], 32
    $region25: #{tpu_custom_call.1} parent=1 // pred_fallthru
      _
    %p54 = scmp.eq.s32.totalorder 0, 0
    // Predicated region
    $region26: #{tpu_custom_call.1} parent=1 // pred_check
      %p55 = pneg %p54
    $region27: #{tpu_custom_call.1} parent=1 // pred_check_branch
      %57 = sbr.rel (%p55) target = $region29
    $region28: #{tpu_custom_call.1} parent=1 // pred_region
      %58 = vst [vmem:[#allocation2] sm:$0xff] 0.0
      %59 = vst [vmem:[#allocation2 + $0x8] sm:$0xff] 0.0
      %60 = vst [vmem:[#allocation2 + $0x10] sm:$0xff] 0.0
      %61 = vst [vmem:[#allocation2 + $0x18] sm:$0xff] 0.0
      %62 = vst [vmem:[#allocation2 + $0x20] sm:$0xff] 0.0
      %63 = vst [vmem:[#allocation2 + $0x28] sm:$0xff] 0.0
      %64 = vst [vmem:[#allocation2 + $0x30] sm:$0xff] 0.0
      %65 = vst [vmem:[#allocation2 + $0x38] sm:$0xff] 0.0
      %66 = vst [vmem:[#allocation2 + $0x40] sm:$0xff] 0.0
      %67 = vst [vmem:[#allocation2 + $0x48] sm:$0xff] 0.0
      %68 = vst [vmem:[#allocation2 + $0x50] sm:$0xff] 0.0
      %69 = vst [vmem:[#allocation2 + $0x58] sm:$0xff] 0.0
      %70 = vst [vmem:[#allocation2 + $0x60] sm:$0xff] 0.0
      %71 = vst [vmem:[#allocation2 + $0x68] sm:$0xff] 0.0
      %72 = vst [vmem:[#allocation2 + $0x70] sm:$0xff] 0.0
      %73 = vst [vmem:[#allocation2 + $0x78] sm:$0xff] 0.0
      %74 = vst [vmem:[#allocation2 + $0x80] sm:$0xff] 0.0
      %75 = vst [vmem:[#allocation2 + $0x88] sm:$0xff] 0.0
      %76 = vst [vmem:[#allocation2 + $0x90] sm:$0xff] 0.0
      %77 = vst [vmem:[#allocation2 + $0x98] sm:$0xff] 0.0
      %78 = vst [vmem:[#allocation2 + $0xa0] sm:$0xff] 0.0
      %79 = vst [vmem:[#allocation2 + $0xa8] sm:$0xff] 0.0
      %80 = vst [vmem:[#allocation2 + $0xb0] sm:$0xff] 0.0
      %81 = vst [vmem:[#allocation2 + $0xb8] sm:$0xff] 0.0
      %82 = vst [vmem:[#allocation2 + $0xc0] sm:$0xff] 0.0
      %83 = vst [vmem:[#allocation2 + $0xc8] sm:$0xff] 0.0
      %84 = vst [vmem:[#allocation2 + $0xd0] sm:$0xff] 0.0
      %85 = vst [vmem:[#allocation2 + $0xd8] sm:$0xff] 0.0
      %86 = vst [vmem:[#allocation2 + $0xe0] sm:$0xff] 0.0
      %87 = vst [vmem:[#allocation2 + $0xe8] sm:$0xff] 0.0
      %88 = vst [vmem:[#allocation2 + $0xf0] sm:$0xff] 0.0
      %89 = vst [vmem:[#allocation2 + $0xf8] sm:$0xff] 0.0
    $region29: #{tpu_custom_call.1} parent=1 // pred_fallthru
      _
    %v90 = vld [vmem:[#allocation2] sm:$0xff]
    %v91 = vld [vmem:[#allocation2 + $0x8] sm:$0xff]
    %v92 = vld [vmem:[#allocation2 + $0x10] sm:$0xff]
    %v93 = vld [vmem:[#allocation2 + $0x18] sm:$0xff]
    %v94 = vld [vmem:[#allocation2 + $0x20] sm:$0xff]
    %v95 = vld [vmem:[#allocation2 + $0x28] sm:$0xff]
    %v96 = vld [vmem:[#allocation2 + $0x30] sm:$0xff]
    %v97 = vld [vmem:[#allocation2 + $0x38] sm:$0xff]
    %v98 = vld [vmem:[#allocation2 + $0x40] sm:$0xff]
    %v99 = vld [vmem:[#allocation2 + $0x48] sm:$0xff]
    %v100 = vld [vmem:[#allocation2 + $0x50] sm:$0xff]
    %v101 = vld [vmem:[#allocation2 + $0x58] sm:$0xff]
    %v102 = vld [vmem:[#allocation2 + $0x60] sm:$0xff]
    %v103 = vld [vmem:[#allocation2 + $0x68] sm:$0xff]
    %v104 = vld [vmem:[#allocation2 + $0x70] sm:$0xff]
    %v105 = vld [vmem:[#allocation2 + $0x78] sm:$0xff]
    %v106 = vld [vmem:[#allocation2 + $0x80] sm:$0xff]
    %v107 = vld [vmem:[#allocation2 + $0x88] sm:$0xff]
    %v108 = vld [vmem:[#allocation2 + $0x90] sm:$0xff]
    %v109 = vld [vmem:[#allocation2 + $0x98] sm:$0xff]
    %v110 = vld [vmem:[#allocation2 + $0xa0] sm:$0xff]
    %v111 = vld [vmem:[#allocation2 + $0xa8] sm:$0xff]
    %v112 = vld [vmem:[#allocation2 + $0xb0] sm:$0xff]
    %v113 = vld [vmem:[#allocation2 + $0xb8] sm:$0xff]
    %v114 = vld [vmem:[#allocation2 + $0xc0] sm:$0xff]
    %v115 = vld [vmem:[#allocation2 + $0xc8] sm:$0xff]
    %v116 = vld [vmem:[#allocation2 + $0xd0] sm:$0xff]
    %v117 = vld [vmem:[#allocation2 + $0xd8] sm:$0xff]
    %v118 = vld [vmem:[#allocation2 + $0xe0] sm:$0xff]
    %v119 = vld [vmem:[#allocation2 + $0xe8] sm:$0xff]
    %v120 = vld [vmem:[#allocation2 + $0xf0] sm:$0xff]
    %v121 = vld [vmem:[#allocation2 + $0xf8] sm:$0xff]
    %v122 = vld [vmem:[#allocation3] sm:$0xff]
    %v123 = vld [vmem:[#allocation3 + $0x8] sm:$0xff]
    %v124 = vld [vmem:[#allocation3 + $0x10] sm:$0xff]
    %v125 = vld [vmem:[#allocation3 + $0x18] sm:$0xff]
    %v126 = vld [vmem:[#allocation3 + $0x20] sm:$0xff]
    %v127 = vld [vmem:[#allocation3 + $0x28] sm:$0xff]
    %v128 = vld [vmem:[#allocation3 + $0x30] sm:$0xff]
    %v129 = vld [vmem:[#allocation3 + $0x38] sm:$0xff]
    %v130 = vld [vmem:[#allocation3 + $0x40] sm:$0xff]
    %v131 = vld [vmem:[#allocation3 + $0x48] sm:$0xff]
    %v132 = vld [vmem:[#allocation3 + $0x50] sm:$0xff]
    %v133 = vld [vmem:[#allocation3 + $0x58] sm:$0xff]
    %v134 = vld [vmem:[#allocation3 + $0x60] sm:$0xff]
    %v135 = vld [vmem:[#allocation3 + $0x68] sm:$0xff]
    %v136 = vld [vmem:[#allocation3 + $0x70] sm:$0xff]
    %v137 = vld [vmem:[#allocation3 + $0x78] sm:$0xff]
    %v138 = vld [vmem:[#allocation6] sm:$0xff]
    %v139 = vld [vmem:[#allocation6 + $0x8] sm:$0xff]
    %v140 = vld [vmem:[#allocation6 + $0x10] sm:$0xff]
    %v141 = vld [vmem:[#allocation6 + $0x18] sm:$0xff]
    %v142 = vld [vmem:[#allocation6 + $0x20] sm:$0xff]
    %v143 = vld [vmem:[#allocation6 + $0x28] sm:$0xff]
    %v144 = vld [vmem:[#allocation6 + $0x30] sm:$0xff]
    %v145 = vld [vmem:[#allocation6 + $0x38] sm:$0xff]
    %v146 = vld [vmem:[#allocation6 + $0x40] sm:$0xff]
    %v147 = vld [vmem:[#allocation6 + $0x48] sm:$0xff]
    %v148 = vld [vmem:[#allocation6 + $0x50] sm:$0xff]
    %v149 = vld [vmem:[#allocation6 + $0x58] sm:$0xff]
    %v150 = vld [vmem:[#allocation6 + $0x60] sm:$0xff]
    %v151 = vld [vmem:[#allocation6 + $0x68] sm:$0xff]
    %v152 = vld [vmem:[#allocation6 + $0x70] sm:$0xff]
    %v153 = vld [vmem:[#allocation6 + $0x78] sm:$0xff]
    %v154 = vld [vmem:[#allocation6 + $0x80] sm:$0xff]
    %v155 = vld [vmem:[#allocation6 + $0x88] sm:$0xff]
    %v156 = vld [vmem:[#allocation6 + $0x90] sm:$0xff]
    %v157 = vld [vmem:[#allocation6 + $0x98] sm:$0xff]
    %v158 = vld [vmem:[#allocation6 + $0xa0] sm:$0xff]
    %v159 = vld [vmem:[#allocation6 + $0xa8] sm:$0xff]
    %v160 = vld [vmem:[#allocation6 + $0xb0] sm:$0xff]
    %v161 = vld [vmem:[#allocation6 + $0xb8] sm:$0xff]
    %v162 = vld [vmem:[#allocation6 + $0xc0] sm:$0xff]
    %v163 = vld [vmem:[#allocation6 + $0xc8] sm:$0xff]
    %v164 = vld [vmem:[#allocation6 + $0xd0] sm:$0xff]
    %v165 = vld [vmem:[#allocation6 + $0xd8] sm:$0xff]
    %v166 = vld [vmem:[#allocation6 + $0xe0] sm:$0xff]
    %v167 = vld [vmem:[#allocation6 + $0xe8] sm:$0xff]
    %v168 = vld [vmem:[#allocation6 + $0xf0] sm:$0xff]
    %v169 = vld [vmem:[#allocation6 + $0xf8] sm:$0xff]
    %170 = vmatprep.subr.mxu0 %v139
    %171 = vmatpush1.msra.mxu0 %v138
    %172 = vmatprep.subr.mxu0 %v141
    %173 = vmatpush1.msra.mxu0 %v140
    %174 = vmatprep.subr.mxu0 %v143
    %175 = vmatpush1.msra.mxu0 %v142
    %176 = vmatprep.subr.mxu0 %v145
    %177 = vmatpush1.msra.mxu0 %v144
    %178 = vmatprep.subr.mxu0 %v147
    %179 = vmatpush1.msra.mxu0 %v146
    %180 = vmatprep.subr.mxu0 %v149
    %181 = vmatpush1.msra.mxu0 %v148
    %182 = vmatprep.subr.mxu0 %v151
    %183 = vmatpush1.msra.mxu0 %v150
    %184 = vmatprep.subr.mxu0 %v153
    %185 = vmatpush1.msra.mxu0 %v152
    %186 = vmatprep.subr.mxu0 %v155
    %187 = vmatpush1.msra.mxu0 %v154
    %188 = vmatprep.subr.mxu0 %v157
    %189 = vmatpush1.msra.mxu0 %v156
    %190 = vmatprep.subr.mxu0 %v159
    %191 = vmatpush1.msra.mxu0 %v158
    %192 = vmatprep.subr.mxu0 %v161
    %193 = vmatpush1.msra.mxu0 %v160
    %194 = vmatprep.subr.mxu0 %v163
    %195 = vmatpush1.msra.mxu0 %v162
    %196 = vmatprep.subr.mxu0 %v165
    %197 = vmatpush1.msra.mxu0 %v164
    %198 = vmatprep.subr.mxu0 %v167
    %199 = vmatpush1.msra.mxu0 %v166
    %200 = vmatprep.subr.mxu0 %v169
    %201 = vmatpush1.msra.mxu0 %v168
    %202 = vmatprep.subr.mxu0 0.0
    %203 = vmatpush1.msra.mxu0 0.0
    %204 = vmatprep.subr.mxu0 0.0
    %205 = vmatpush1.msra.mxu0 0.0
    %206 = vmatprep.subr.mxu0 0.0
    %207 = vmatpush1.msra.mxu0 0.0
    %208 = vmatprep.subr.mxu0 0.0
    %209 = vmatpush1.msra.mxu0 0.0
    %210 = vmatprep.subr.mxu0 0.0
    %211 = vmatpush1.msra.mxu0 0.0
    %212 = vmatprep.subr.mxu0 0.0
    %213 = vmatpush1.msra.mxu0 0.0
    %214 = vmatprep.subr.mxu0 0.0
    %215 = vmatpush1.msra.mxu0 0.0
    %216 = vmatprep.subr.mxu0 0.0
    %217 = vmatpush1.msra.mxu0 0.0
    %218 = vmatprep.subr.mxu0 0.0
    %219 = vmatpush1.msra.mxu0 0.0
    %220 = vmatprep.subr.mxu0 0.0
    %221 = vmatpush1.msra.mxu0 0.0
    %222 = vmatprep.subr.mxu0 0.0
    %223 = vmatpush1.msra.mxu0 0.0
    %224 = vmatprep.subr.mxu0 0.0
    %225 = vmatpush1.msra.mxu0 0.0
    %226 = vmatprep.subr.mxu0 0.0
    %227 = vmatpush1.msra.mxu0 0.0
    %228 = vmatprep.subr.mxu0 0.0
    %229 = vmatpush1.msra.mxu0 0.0
    %230 = vmatprep.subr.mxu0 0.0
    %231 = vmatpush1.msra.mxu0 0.0
    %232 = vmatprep.subr.mxu0 0.0
    %233 = vmatpush1.msra.mxu0 0.0
    %234 = vmatprep.mubr.f32.mxu0 0.0
    %235 = vmatmul.mubr.f32.gmra.mrb[0].mxu0 %v122
    %v236 = vpop.f32.mrb[0].mxu0
    %v237 = vadd.f32 0.0, %v236
    %v238 = vpop.f32.mrb[0].mxu0
    %v239 = vadd.f32 0.0, %v238
    %240 = vmatprep.mubr.f32.mxu0 0.0
    %241 = vmatmul.mubr.f32.gmra.mrb[0].mxu0 %v123
    %v242 = vpop.f32.mrb[0].mxu0
    %v243 = vadd.f32 0.0, %v242
    %v244 = vpop.f32.mrb[0].mxu0
    %v245 = vadd.f32 0.0, %v244
    %246 = vmatprep.mubr.f32.mxu0 0.0
    %247 = vmatmul.mubr.f32.gmra.mrb[0].mxu0 %v124
    %v248 = vpop.f32.mrb[0].mxu0
    %v249 = vadd.f32 0.0, %v248
    %v250 = vpop.f32.mrb[0].mxu0
    %v251 = vadd.f32 0.0, %v250
    %252 = vmatprep.mubr.f32.mxu0 0.0
    %253 = vmatmul.mubr.f32.gmra.mrb[0].mxu0 %v125
    %v254 = vpop.f32.mrb[0].mxu0
    %v255 = vadd.f32 0.0, %v254
    %v256 = vpop.f32.mrb[0].mxu0
    %v257 = vadd.f32 0.0, %v256
    %258 = vmatprep.mubr.f32.mxu0 0.0
    %259 = vmatmul.mubr.f32.gmra.mrb[0].mxu0 %v126
    %v260 = vpop.f32.mrb[0].mxu0
    %v261 = vadd.f32 0.0, %v260
    %v262 = vpop.f32.mrb[0].mxu0
    %v263 = vadd.f32 0.0, %v262
    %264 = vmatprep.mubr.f32.mxu0 0.0
    %265 = vmatmul.mubr.f32.gmra.mrb[0].mxu0 %v127
    %v266 = vpop.f32.mrb[0].mxu0
    %v267 = vadd.f32 0.0, %v266
    %v268 = vpop.f32.mrb[0].mxu0
    %v269 = vadd.f32 0.0, %v268
    %270 = vmatprep.mubr.f32.mxu0 0.0
    %271 = vmatmul.mubr.f32.gmra.mrb[0].mxu0 %v128
    %v272 = vpop.f32.mrb[0].mxu0
    %v273 = vadd.f32 0.0, %v272
    %v274 = vpop.f32.mrb[0].mxu0
    %v275 = vadd.f32 0.0, %v274
    %276 = vmatprep.mubr.f32.mxu0 0.0
    %277 = vmatmul.mubr.f32.gmra.mrb[0].mxu0 %v129
    %v278 = vpop.f32.mrb[0].mxu0
    %v279 = vadd.f32 0.0, %v278
    %v280 = vpop.f32.mrb[0].mxu0
    %v281 = vadd.f32 0.0, %v280
    %282 = vmatprep.mubr.f32.mxu0 0.0
    %283 = vmatmul.mubr.f32.gmra.mrb[0].mxu0 %v130
    %v284 = vpop.f32.mrb[0].mxu0
    %v285 = vadd.f32 0.0, %v284
    %v286 = vpop.f32.mrb[0].mxu0
    %v287 = vadd.f32 0.0, %v286
    %288 = vmatprep.mubr.f32.mxu0 0.0
    %289 = vmatmul.mubr.f32.gmra.mrb[0].mxu0 %v131
    %v290 = vpop.f32.mrb[0].mxu0
    %v291 = vadd.f32 0.0, %v290
    %v292 = vpop.f32.mrb[0].mxu0
    %v293 = vadd.f32 0.0, %v292
    %294 = vmatprep.mubr.f32.mxu0 0.0
    %295 = vmatmul.mubr.f32.gmra.mrb[0].mxu0 %v132
    %v296 = vpop.f32.mrb[0].mxu0
    %v297 = vadd.f32 0.0, %v296
    %v298 = vpop.f32.mrb[0].mxu0
    %v299 = vadd.f32 0.0, %v298
    %300 = vmatprep.mubr.f32.mxu0 0.0
    %301 = vmatmul.mubr.f32.gmra.mrb[0].mxu0 %v133
    %v302 = vpop.f32.mrb[0].mxu0
    %v303 = vadd.f32 0.0, %v302
    %v304 = vpop.f32.mrb[0].mxu0
    %v305 = vadd.f32 0.0, %v304
    %306 = vmatprep.mubr.f32.mxu0 0.0
    %307 = vmatmul.mubr.f32.gmra.mrb[0].mxu0 %v134
    %v308 = vpop.f32.mrb[0].mxu0
    %v309 = vadd.f32 0.0, %v308
    %v310 = vpop.f32.mrb[0].mxu0
    %v311 = vadd.f32 0.0, %v310
    %312 = vmatprep.mubr.f32.mxu0 0.0
    %313 = vmatmul.mubr.f32.gmra.mrb[0].mxu0 %v135
    %v314 = vpop.f32.mrb[0].mxu0
    %v315 = vadd.f32 0.0, %v314
    %v316 = vpop.f32.mrb[0].mxu0
    %v317 = vadd.f32 0.0, %v316
    %318 = vmatprep.mubr.f32.mxu0 0.0
    %319 = vmatmul.mubr.f32.gmra.mrb[0].mxu0 %v136
    %v320 = vpop.f32.mrb[0].mxu0
    %v321 = vadd.f32 0.0, %v320
    %v322 = vpop.f32.mrb[0].mxu0
    %v323 = vadd.f32 0.0, %v322
    %324 = vmatprep.mubr.f32.mxu0 0.0
    %325 = vmatmul.mubr.f32.gmra.mrb[0].mxu0 %v137
    %v326 = vpop.f32.mrb[0].mxu0
    %v327 = vadd.f32 0.0, %v326
    %v328 = vpop.f32.mrb[0].mxu0
    %v329 = vadd.f32 0.0, %v328
    %330 = vdwg.mxu0
    %v331 = vadd.f32 %v90, %v237
    %v332 = vadd.f32 %v91, %v239
    %v333 = vadd.f32 %v92, %v243
    %v334 = vadd.f32 %v93, %v245
    %v335 = vadd.f32 %v94, %v249
    %v336 = vadd.f32 %v95, %v251
    %v337 = vadd.f32 %v96, %v255
    %v338 = vadd.f32 %v97, %v257
    %v339 = vadd.f32 %v98, %v261
    %v340 = vadd.f32 %v99, %v263
    %v341 = vadd.f32 %v100, %v267
    %v342 = vadd.f32 %v101, %v269
    %v343 = vadd.f32 %v102, %v273
    %v344 = vadd.f32 %v103, %v275
    %v345 = vadd.f32 %v104, %v279
    %v346 = vadd.f32 %v105, %v281
    %v347 = vadd.f32 %v106, %v285
    %v348 = vadd.f32 %v107, %v287
    %v349 = vadd.f32 %v108, %v291
    %v350 = vadd.f32 %v109, %v293
    %v351 = vadd.f32 %v110, %v297
    %v352 = vadd.f32 %v111, %v299
    %v353 = vadd.f32 %v112, %v303
    %v354 = vadd.f32 %v113, %v305
    %v355 = vadd.f32 %v114, %v309
    %v356 = vadd.f32 %v115, %v311
    %v357 = vadd.f32 %v116, %v315
    %v358 = vadd.f32 %v117, %v317
    %v359 = vadd.f32 %v118, %v321
    %v360 = vadd.f32 %v119, %v323
    %v361 = vadd.f32 %v120, %v327
    %v362 = vadd.f32 %v121, %v329
    %363 = vst [vmem:[#allocation2] sm:$0xff] %v331
    %364 = vst [vmem:[#allocation2 + $0x8] sm:$0xff] %v332
    %365 = vst [vmem:[#allocation2 + $0x10] sm:$0xff] %v333
    %366 = vst [vmem:[#allocation2 + $0x18] sm:$0xff] %v334
    %367 = vst [vmem:[#allocation2 + $0x20] sm:$0xff] %v335
    %368 = vst [vmem:[#allocation2 + $0x28] sm:$0xff] %v336
    %369 = vst [vmem:[#allocation2 + $0x30] sm:$0xff] %v337
    %370 = vst [vmem:[#allocation2 + $0x38] sm:$0xff] %v338
    %371 = vst [vmem:[#allocation2 + $0x40] sm:$0xff] %v339
    %372 = vst [vmem:[#allocation2 + $0x48] sm:$0xff] %v340
    %373 = vst [vmem:[#allocation2 + $0x50] sm:$0xff] %v341
    %374 = vst [vmem:[#allocation2 + $0x58] sm:$0xff] %v342
    %375 = vst [vmem:[#allocation2 + $0x60] sm:$0xff] %v343
    %376 = vst [vmem:[#allocation2 + $0x68] sm:$0xff] %v344
    %377 = vst [vmem:[#allocation2 + $0x70] sm:$0xff] %v345
    %378 = vst [vmem:[#allocation2 + $0x78] sm:$0xff] %v346
    %379 = vst [vmem:[#allocation2 + $0x80] sm:$0xff] %v347
    %380 = vst [vmem:[#allocation2 + $0x88] sm:$0xff] %v348
    %381 = vst [vmem:[#allocation2 + $0x90] sm:$0xff] %v349
    %382 = vst [vmem:[#allocation2 + $0x98] sm:$0xff] %v350
    %383 = vst [vmem:[#allocation2 + $0xa0] sm:$0xff] %v351
    %384 = vst [vmem:[#allocation2 + $0xa8] sm:$0xff] %v352
    %385 = vst [vmem:[#allocation2 + $0xb0] sm:$0xff] %v353
    %386 = vst [vmem:[#allocation2 + $0xb8] sm:$0xff] %v354
    %387 = vst [vmem:[#allocation2 + $0xc0] sm:$0xff] %v355
    %388 = vst [vmem:[#allocation2 + $0xc8] sm:$0xff] %v356
    %389 = vst [vmem:[#allocation2 + $0xd0] sm:$0xff] %v357
    %390 = vst [vmem:[#allocation2 + $0xd8] sm:$0xff] %v358
    %391 = vst [vmem:[#allocation2 + $0xe0] sm:$0xff] %v359
    %392 = vst [vmem:[#allocation2 + $0xe8] sm:$0xff] %v360
    %393 = vst [vmem:[#allocation2 + $0xf0] sm:$0xff] %v361
    %394 = vst [vmem:[#allocation2 + $0xf8] sm:$0xff] %v362
    // Predicated region
    $region30: #{tpu_custom_call.1} parent=1 // pred_check
      %p395 = pneg %p54
    $region31: #{tpu_custom_call.1} parent=1 // pred_check_branch
      %397 = sbr.rel (%p395) target = $region33
    $region32: #{tpu_custom_call.1} parent=1 // pred_region
      %v398 = vld [vmem:[#allocation2] sm:$0xff]
      %v399 = vld [vmem:[#allocation2 + $0x8] sm:$0xff]
      %v400 = vld [vmem:[#allocation2 + $0x10] sm:$0xff]
      %v401 = vld [vmem:[#allocation2 + $0x18] sm:$0xff]
      %v402 = vld [vmem:[#allocation2 + $0x20] sm:$0xff]
      %v403 = vld [vmem:[#allocation2 + $0x28] sm:$0xff]
      %v404 = vld [vmem:[#allocation2 + $0x30] sm:$0xff]
      %v405 = vld [vmem:[#allocation2 + $0x38] sm:$0xff]
      %v406 = vld [vmem:[#allocation2 + $0x40] sm:$0xff]
      %v407 = vld [vmem:[#allocation2 + $0x48] sm:$0xff]
      %v408 = vld [vmem:[#allocation2 + $0x50] sm:$0xff]
      %v409 = vld [vmem:[#allocation2 + $0x58] sm:$0xff]
      %v410 = vld [vmem:[#allocation2 + $0x60] sm:$0xff]
      %v411 = vld [vmem:[#allocation2 + $0x68] sm:$0xff]
      %v412 = vld [vmem:[#allocation2 + $0x70] sm:$0xff]
      %v413 = vld [vmem:[#allocation2 + $0x78] sm:$0xff]
      %v414 = vld [vmem:[#allocation2 + $0x80] sm:$0xff]
      %v415 = vld [vmem:[#allocation2 + $0x88] sm:$0xff]
      %v416 = vld [vmem:[#allocation2 + $0x90] sm:$0xff]
      %v417 = vld [vmem:[#allocation2 + $0x98] sm:$0xff]
      %v418 = vld [vmem:[#allocation2 + $0xa0] sm:$0xff]
      %v419 = vld [vmem:[#allocation2 + $0xa8] sm:$0xff]
      %v420 = vld [vmem:[#allocation2 + $0xb0] sm:$0xff]
      %v421 = vld [vmem:[#allocation2 + $0xb8] sm:$0xff]
      %v422 = vld [vmem:[#allocation2 + $0xc0] sm:$0xff]
      %v423 = vld [vmem:[#allocation2 + $0xc8] sm:$0xff]
      %v424 = vld [vmem:[#allocation2 + $0xd0] sm:$0xff]
      %v425 = vld [vmem:[#allocation2 + $0xd8] sm:$0xff]
      %v426 = vld [vmem:[#allocation2 + $0xe0] sm:$0xff]
      %v427 = vld [vmem:[#allocation2 + $0xe8] sm:$0xff]
      %v428 = vld [vmem:[#allocation2 + $0xf0] sm:$0xff]
      %v429 = vld [vmem:[#allocation2 + $0xf8] sm:$0xff]
      %v430 = vld [vmem:[#allocation8] sm:$0x3]
      %v432 = vlaneseq
      %v433 = vshrl.u32 %v432, 7
      %v434 = vsub.s32 0, %v433
      %v435 = vrot.slane %v430, %v434
      %v436 = vlaneseq
      %v437 = vshrl.u32 %v436, 7
      %v438 = vsub.s32 1, %v437
      %v439 = vrot.slane %v430, %v438
      %v442 = vadd.f32 %v398, %v435
      %v443 = vadd.f32 %v399, %v439
      %v444 = vadd.f32 %v400, %v435
      %v445 = vadd.f32 %v401, %v439
      %v446 = vadd.f32 %v402, %v435
      %v447 = vadd.f32 %v403, %v439
      %v448 = vadd.f32 %v404, %v435
      %v449 = vadd.f32 %v405, %v439
      %v450 = vadd.f32 %v406, %v435
      %v451 = vadd.f32 %v407, %v439
      %v452 = vadd.f32 %v408, %v435
      %v453 = vadd.f32 %v409, %v439
      %v454 = vadd.f32 %v410, %v435
      %v455 = vadd.f32 %v411, %v439
      %v456 = vadd.f32 %v412, %v435
      %v457 = vadd.f32 %v413, %v439
      %v458 = vadd.f32 %v414, %v435
      %v459 = vadd.f32 %v415, %v439
      %v460 = vadd.f32 %v416, %v435
      %v461 = vadd.f32 %v417, %v439
      %v462 = vadd.f32 %v418, %v435
      %v463 = vadd.f32 %v419, %v439
      %v464 = vadd.f32 %v420, %v435
      %v465 = vadd.f32 %v421, %v439
      %v466 = vadd.f32 %v422, %v435
      %v467 = vadd.f32 %v423, %v439
      %v468 = vadd.f32 %v424, %v435
      %v469 = vadd.f32 %v425, %v439
      %v470 = vadd.f32 %v426, %v435
      %v471 = vadd.f32 %v427, %v439
      %v472 = vadd.f32 %v428, %v435
      %v473 = vadd.f32 %v429, %v439
      %474 = vst [vmem:[#allocation9] sm:$0xff] %v442
      %475 = vst [vmem:[#allocation9 + $0x8] sm:$0xff] %v443
      %476 = vst [vmem:[#allocation9 + $0x10] sm:$0xff] %v444
      %477 = vst [vmem:[#allocation9 + $0x18] sm:$0xff] %v445
      %478 = vst [vmem:[#allocation9 + $0x20] sm:$0xff] %v446
      %479 = vst [vmem:[#allocation9 + $0x28] sm:$0xff] %v447
      %480 = vst [vmem:[#allocation9 + $0x30] sm:$0xff] %v448
      %481 = vst [vmem:[#allocation9 + $0x38] sm:$0xff] %v449
      %482 = vst [vmem:[#allocation9 + $0x40] sm:$0xff] %v450
      %483 = vst [vmem:[#allocation9 + $0x48] sm:$0xff] %v451
      %484 = vst [vmem:[#allocation9 + $0x50] sm:$0xff] %v452
      %485 = vst [vmem:[#allocation9 + $0x58] sm:$0xff] %v453
      %486 = vst [vmem:[#allocation9 + $0x60] sm:$0xff] %v454
      %487 = vst [vmem:[#allocation9 + $0x68] sm:$0xff] %v455
      %488 = vst [vmem:[#allocation9 + $0x70] sm:$0xff] %v456
      %489 = vst [vmem:[#allocation9 + $0x78] sm:$0xff] %v457
      %490 = vst [vmem:[#allocation9 + $0x80] sm:$0xff] %v458
      %491 = vst [vmem:[#allocation9 + $0x88] sm:$0xff] %v459
      %492 = vst [vmem:[#allocation9 + $0x90] sm:$0xff] %v460
      %493 = vst [vmem:[#allocation9 + $0x98] sm:$0xff] %v461
      %494 = vst [vmem:[#allocation9 + $0xa0] sm:$0xff] %v462
      %495 = vst [vmem:[#allocation9 + $0xa8] sm:$0xff] %v463
      %496 = vst [vmem:[#allocation9 + $0xb0] sm:$0xff] %v464
      %497 = vst [vmem:[#allocation9 + $0xb8] sm:$0xff] %v465
      %498 = vst [vmem:[#allocation9 + $0xc0] sm:$0xff] %v466
      %499 = vst [vmem:[#allocation9 + $0xc8] sm:$0xff] %v467
      %500 = vst [vmem:[#allocation9 + $0xd0] sm:$0xff] %v468
      %501 = vst [vmem:[#allocation9 + $0xd8] sm:$0xff] %v469
      %502 = vst [vmem:[#allocation9 + $0xe0] sm:$0xff] %v470
      %503 = vst [vmem:[#allocation9 + $0xe8] sm:$0xff] %v471
      %504 = vst [vmem:[#allocation9 + $0xf0] sm:$0xff] %v472
      %505 = vst [vmem:[#allocation9 + $0xf8] sm:$0xff] %v473
    $region33: #{tpu_custom_call.1} parent=1 // pred_fallthru
      _
    // Predicated region
    $region34: #{tpu_custom_call.1} parent=1 // pred_check
      _
    $region35: #{tpu_custom_call.1} parent=1 // pred_check_branch
      %507 = sbr.rel (0) target = $region37
    $region36: #{tpu_custom_call.1} parent=1 // pred_region
      %s509 = ssub.s32 4096, 4096
      %510 = vsyncadd [#allocation5], %s509
      %s511 = sshll.u32 [#allocation9], 4
      %s512 = int_to_ptr.vmem [resolvable:$true] %s511
      %517 = dma.vmem_to_hbm [thread:$0]  %s512, 4096, %s3, [#allocation5], 256, 256, 16
    $region37: #{tpu_custom_call.1} parent=1 // pred_fallthru
      _
    // Predicated region
    $region38: #{tpu_custom_call.1} parent=1 // pred_check
      _
    $region39: #{tpu_custom_call.1} parent=1 // pred_check_branch
      %519 = sbr.rel (0) target = $region41
    $region40: #{tpu_custom_call.1} parent=1 // pred_region
      %520 = dma.done [#allocation5], 4096
    $region41: #{tpu_custom_call.1} parent=1 // pred_fallthru
      _
    %521 = vsyncpa [#allocation4], 1
    %522 = vsyncpa [#allocation7], 1
    %523 = vsyncpa [#allocation5], 1

</llo_original>
